<compile_context>
chip_gen: v5e
topology: v5e:2x2
jax: 0.10.0
libtpu: 0.0.40
codegen_flags: <defaults>
</compile_context>

<pallas_src>
import math

import jax
import jax.numpy as jnp
from jax import lax
from jax.experimental import pallas as pl
from jax.experimental.pallas import tpu as pltpu


def _round_up(n, m):
    return (n + m - 1) // m * m


def _gelu_exact(x):
    # PyTorch nn.GELU() default: exact erf-based GELU (computed in f32).
    return 0.5 * x * (1.0 + lax.erf(x * (1.0 / math.sqrt(2.0))))


# --------------------------------------------------------------------------
# Kernel: one (tm, Cp) row tile x one (th) hidden chunk per grid step.
# --------------------------------------------------------------------------
def mlp_kernel(x_ref, w1_ref, b1_ref, w2_ref, b2_ref, o_ref, acc_ref):
    # x_ref:  (tm, Cp)   streamed token tile (bf16 if padded, else input dtype)
    # w1_ref: (Cp, th)   fc1 weight chunk, matmul dtype
    # b1_ref: (1, th)    fc1 bias chunk, f32
    # w2_ref: (th, Cop)  fc2 weight chunk, matmul dtype
    # b2_ref: (1, Cop)   fc2 bias, f32
    # acc_ref:(tm, Cop)  f32 accumulator scratch (resident across hidden axis)
    k = pl.program_id(1)

    @pl.when(k == 0)
    def _():
        acc_ref[...] = jnp.zeros_like(acc_ref)

    x = x_ref[...].astype(w1_ref.dtype)                  # MXU operand
    h = jnp.dot(x, w1_ref[...], preferred_element_type=jnp.float32)
    h = _gelu_exact(h + b1_ref[...])                     # bias + GELU in f32
    acc_ref[...] += jnp.dot(h.astype(w2_ref.dtype), w2_ref[...],
                            preferred_element_type=jnp.float32)

    @pl.when(k == pl.num_programs(1) - 1)
    def _():
        o_ref[...] = (acc_ref[...] + b2_ref[...]).astype(o_ref.dtype)


# --------------------------------------------------------------------------
# Tile / budget selection helpers.
# --------------------------------------------------------------------------
def _vmem_budget_bytes():
    """Per-generation VMEM budget (~0.75x physical capacity)."""
    cap = 64 << 20
    try:
        info = pltpu.get_tpu_info()
        cap = int(getattr(info, "vmem_capacity_bytes", cap))
    except Exception:
        pass
    return max(16 << 20, int(0.75 * cap))


def _choose_tm(M, tm_target):
    """Row tile: multiple of 8, prefer a divisor of M (no activation padding),
    and always leave >= 2 tiles so both v7x TensorCores get work."""
    tm_target = max(8, _round_up(tm_target, 8))
    if M <= 8:
        return _round_up(max(M, 1), 8)
    cap = min(tm_target, max(8, _round_up((M + 1) // 2, 8)))
    for t in range(cap, 7, -8):
        if M % t == 0:
            return t
    return cap


def _choose_th(Hp, th_target):
    """Hidden tile: multiple of 128 that divides Hp (Hp itself is a multiple
    of 128), as large as possible but <= th_target."""
    q = Hp // 128
    dmax = max(1, min(th_target // 128, q))
    for d in range(dmax, 0, -1):
        if q % d == 0:
            return d * 128
    return 128


def _step_vmem_bytes(tm, th, Cp, Cop, x_bytes, out_bytes, w_bytes):
    """Per-grid-step VMEM footprint (double-buffered streamed operands +
    accumulator scratch + f32 intermediates)."""
    return (2 * tm * Cp * x_bytes            # x tile
            + 2 * Cp * th * w_bytes          # w1 chunk
            + 2 * th * 4                     # b1 chunk (f32)
            + 2 * th * Cop * w_bytes         # w2 chunk
            + 2 * Cop * 4                    # b2 (f32)
            + 2 * tm * Cop * out_bytes       # out tile
            + tm * Cop * 4                   # f32 accumulator scratch
            + 2 * tm * th * 4)               # f32 intermediate (h, GELU temps)


# --------------------------------------------------------------------------
# Parameter prep (done once, outside the forward) and forward pass.
# --------------------------------------------------------------------------
def prepare_mlp_params(w1, b1, w2, b2, matmul_dtype=jnp.bfloat16):
    """Pad every channel dim to a multiple of 128 lanes and cast weights to
    the matmul dtype once (hoisted out of the per-call path).

    w1: (C, hidden), b1: (hidden,), w2: (hidden, Cout), b2: (Cout,)
    (weights stored transposed vs. PyTorch so the kernel computes x @ W).
    """
    C, hidden = w1.shape
    Cout = w2.shape[1]
    Cp, Hp, Cop = _round_up(C, 128), _round_up(hidden, 128), _round_up(Cout, 128)
    w1p = jnp.pad(w1, ((0, Cp - C), (0, Hp - hidden))).astype(matmul_dtype)
    w2p = jnp.pad(w2, ((0, Hp - hidden), (0, Cop - Cout))).astype(matmul_dtype)
    b1p = jnp.pad(b1, (0, Hp - hidden)).reshape(1, Hp).astype(jnp.float32)
    b2p = jnp.pad(b2, (0, Cop - Cout)).reshape(1, Cop).astype(jnp.float32)
    return dict(w1=w1p, b1=b1p, w2=w2p, b2=b2p,
                C=C, hidden=hidden, Cout=Cout, matmul_dtype=matmul_dtype)


def mlp_forward(x, params):
    """Fused MLP. x: (B, H, W, C) channels-last -> (B, H, W, Cout)."""
    B, H, W, C = x.shape
    assert C == params["C"]
    Cout = params["Cout"]
    w1p, b1p, w2p, b2p = params["w1"], params["b1"], params["w2"], params["b2"]
    mdt = params["matmul_dtype"]
    Cp, Hp = w1p.shape
    Cop = w2p.shape[1]
    out_dtype = x.dtype

    M = B * H * W
    budget = _vmem_budget_bytes()

    # Row tile: 512 where the chip has the VMEM (v5e/v6e, 128 MiB), 256 on
    # v7x-class chips (64 MiB).  Hidden tile starts at 512 columns.
    tm_target = 512 if budget >= (80 << 20) else 256
    tm = _choose_tm(M, tm_target)
    th = _choose_th(Hp, 512)

    # Shrink th, then tm, until the per-step footprint fits the budget
    # (conservative: assume f32 streamed x for the estimate).
    x_est = jnp.dtype(x.dtype).itemsize
    out_b = jnp.dtype(out_dtype).itemsize
    w_b = jnp.dtype(mdt).itemsize
    while (th > 128
           and _step_vmem_bytes(tm, th, Cp, Cop, x_est, out_b, w_b) > budget):
        th = _choose_th(Hp, max(128, th // 2))
    while (tm > 8
           and _step_vmem_bytes(tm, th, Cp, Cop, x_est, out_b, w_b) > budget):
        tm = max(8, _round_up(tm // 2, 8))

    Mp = _round_up(M, tm)
    est = _step_vmem_bytes(tm, th, Cp, Cop, x_est, out_b, w_b)
    vmem_limit = int(min(budget, max(16 << 20, 2 * est)))

    # Activations: avoid the extra HBM pass when no padding is needed; if a
    # pad is needed anyway, fuse the bf16 cast so the streamed bytes halve.
    x2 = x.reshape(M, C)
    if (Mp != M) or (Cp != C):
        xf = jnp.pad(x2, ((0, Mp - M), (0, Cp - C))).astype(mdt)
    else:
        xf = x2

    grid = (Mp // tm, Hp // th)
    out = pl.pallas_call(
        mlp_kernel,
        out_shape=jax.ShapeDtypeStruct((Mp, Cop), out_dtype),
        grid_spec=pltpu.PrefetchScalarGridSpec(
            num_scalar_prefetch=0,
            grid=grid,
            in_specs=[
                pl.BlockSpec((tm, Cp), lambda i, k: (i, 0)),   # x (fetched once per i)
                pl.BlockSpec((Cp, th), lambda i, k: (0, k)),   # w1 chunk
                pl.BlockSpec((1, th), lambda i, k: (0, k)),    # b1 chunk
                pl.BlockSpec((th, Cop), lambda i, k: (k, 0)),  # w2 chunk
                pl.BlockSpec((1, Cop), lambda i, k: (0, 0)),   # b2
            ],
            out_specs=pl.BlockSpec((tm, Cop), lambda i, k: (i, 0)),
            scratch_shapes=[pltpu.VMEM((tm, Cop), jnp.float32)],
        ),
        compiler_params=pltpu.CompilerParams(
            dimension_semantics=("parallel", "arbitrary"),
            vmem_limit_bytes=vmem_limit,
        ),
    )(xf, w1p, b1p, w2p, b2p)

    if (Mp != M) or (Cop != Cout):
        out = out[:M, :Cout]
    return out.reshape(B, H, W, Cout)


def init_mlp_params(key, in_features, hidden_features, out_features,
                    dtype=jnp.float32):
    """Deterministic synthetic init mimicking nn.Linear default (uniform)."""
    k1, k2, k3, k4 = jax.random.split(key, 4)
    bound1 = 1.0 / math.sqrt(in_features)
    bound2 = 1.0 / math.sqrt(hidden_features)
    # Stored as (in, out) so the kernel computes x @ W (PyTorch does x @ W.T).
    w1 = jax.random.uniform(k1, (in_features, hidden_features), dtype,
                            minval=-bound1, maxval=bound1)
    b1 = jax.random.uniform(k2, (hidden_features,), dtype,
                            minval=-bound1, maxval=bound1)
    w2 = jax.random.uniform(k3, (hidden_features, out_features), dtype,
                            minval=-bound2, maxval=bound2)
    b2 = jax.random.uniform(k4, (out_features,), dtype,
                            minval=-bound2, maxval=bound2)
    return w1, b1, w2, b2


if __name__ == "__main__":
    # Small shapes consistent with the module: channels-last tokens.
    B, H, W = 2, 8, 8
    in_features = 16
    hidden_features = 32
    out_features = 16   # out_features defaults to in_features

    key = jax.random.PRNGKey(0)
    kx, kp = jax.random.split(key)
    x = jax.random.normal(kx, (B, H, W, in_features), jnp.float32)
    w1, b1, w2, b2 = init_mlp_params(kp, in_features, hidden_features,
                                     out_features)

    params = prepare_mlp_params(w1, b1, w2, b2)   # pad/cast once (hoisted)
    out = mlp_forward(x, params)
    out = jax.block_until_ready(out)

    # Pure-JAX f32 reference (dropout p=0.0 is identity).
    h_ref = jnp.einsum("bhwc,cf->bhwf", x, w1) + b1
    h_ref = 0.5 * h_ref * (1.0 + lax.erf(h_ref / math.sqrt(2.0)))
    ref = jnp.einsum("bhwf,fo->bhwo", h_ref, w2) + b2

    assert out.shape == (B, H, W, out_features)
    # bf16 MXU operands with f32 accumulation -> loose tolerance vs f32 ref.
    assert jnp.allclose(out, ref, rtol=3e-2, atol=3e-2), (
        float(jnp.max(jnp.abs(out - ref))))
    print("KERNEL_OK")
</pallas_src>

<mosaic_0001>
module attributes {stable_mosaic.version = 11 : i64} {
  func.func @mlp_kernel(%arg0: i32, %arg1: i32, %arg2: memref<64x128xbf16, #tpu.memory_space<vmem>>, %arg3: memref<128x128xbf16, #tpu.memory_space<vmem>>, %arg4: memref<1x128xf32, #tpu.memory_space<vmem>>, %arg5: memref<128x128xbf16, #tpu.memory_space<vmem>>, %arg6: memref<1x128xf32, #tpu.memory_space<vmem>>, %arg7: memref<64x128xf32, #tpu.memory_space<vmem>>, %arg8: memref<64x128xf32, #tpu.memory_space<vmem>>) attributes {dimension_semantics = [#tpu.dimension_semantics<parallel>, #tpu.dimension_semantics<arbitrary>], iteration_bounds = array<i64: 2, 1>, scalar_prefetch = 0 : i64, scratch_operands = 1 : i64, tpu.core_type = #tpu.core_type<tc>, window_params = [{transform_indices = @transform_0, window_bounds = array<i64: 64, 128>}, {transform_indices = @transform_1, window_bounds = array<i64: 128, 128>}, {transform_indices = @transform_2, window_bounds = array<i64: 1, 128>}, {transform_indices = @transform_3, window_bounds = array<i64: 128, 128>}, {pipeline_mode = #tpu.pipeline_mode<synchronous>, transform_indices = @transform_4, window_bounds = array<i64: 1, 128>}, {transform_indices = @transform_5, window_bounds = array<i64: 64, 128>}]} {
    %c0_i32 = arith.constant 0 : i32
    %0 = arith.cmpi eq, %arg1, %c0_i32 : i32
    %1 = arith.extui %0 : i1 to i32
    %c0_i32_0 = arith.constant 0 : i32
    %2 = arith.cmpi ne, %1, %c0_i32_0 : i32
    scf.if %2 {
      %cst_18 = arith.constant 0.000000e+00 : f32
      %26 = vector.broadcast %cst_18 : f32 to vector<64x128xf32>
      %c0_19 = arith.constant 0 : index
      %c0_20 = arith.constant 0 : index
      %27 = vector.load %arg8[%c0_19, %c0_20] : memref<64x128xf32, #tpu.memory_space<vmem>>, vector<64x128xf32>
      tpu.vector_store %arg8[%c0_19, %c0_20], %26 {strides = array<i32>} : memref<64x128xf32, #tpu.memory_space<vmem>>, vector<64x128xf32>,
    } else {
    }
    %c0 = arith.constant 0 : index
    %c0_1 = arith.constant 0 : index
    %3 = vector.load %arg2[%c0, %c0_1] : memref<64x128xbf16, #tpu.memory_space<vmem>>, vector<64x128xbf16>
    %c0_2 = arith.constant 0 : index
    %c0_3 = arith.constant 0 : index
    %4 = vector.load %arg3[%c0_2, %c0_3] : memref<128x128xbf16, #tpu.memory_space<vmem>>, vector<128x128xbf16>
    %cst = arith.constant dense<0.000000e+00> : vector<64x128xf32>
    %5 = tpu.matmul %3, %4, %cst {dimension_numbers = #tpu.dot_dimension_numbers<[1], [0], [0], [1], [0, 0, 1, 1], [], []>} : vector<64x128xbf16>, vector<128x128xbf16>, vector<64x128xf32> -> vector<64x128xf32>
    %c0_4 = arith.constant 0 : index
    %c0_5 = arith.constant 0 : index
    %6 = vector.load %arg4[%c0_4, %c0_5] : memref<1x128xf32, #tpu.memory_space<vmem>>, vector<1x128xf32>
    %7 = vector.broadcast %6 : vector<1x128xf32> to vector<64x128xf32>
    %8 = arith.addf %5, %7 : vector<64x128xf32>
    %cst_6 = arith.constant 5.000000e-01 : f32
    %9 = vector.broadcast %cst_6 : f32 to vector<64x128xf32>
    %10 = arith.mulf %9, %8 : vector<64x128xf32>
    %cst_7 = arith.constant 0.707106769 : f32
    %11 = vector.broadcast %cst_7 : f32 to vector<64x128xf32>
    %12 = arith.mulf %8, %11 : vector<64x128xf32>
    %13 = math.erf %12 : vector<64x128xf32>
    %cst_8 = arith.constant 1.000000e+00 : f32
    %14 = vector.broadcast %cst_8 : f32 to vector<64x128xf32>
    %15 = arith.addf %14, %13 : vector<64x128xf32>
    %16 = arith.mulf %10, %15 : vector<64x128xf32>
    %c0_9 = arith.constant 0 : index
    %c0_10 = arith.constant 0 : index
    %17 = vector.load %arg8[%c0_9, %c0_10] : memref<64x128xf32, #tpu.memory_space<vmem>>, vector<64x128xf32>
    %18 = arith.truncf %16 : vector<64x128xf32> to vector<64x128xbf16>
    %c0_11 = arith.constant 0 : index
    %c0_12 = arith.constant 0 : index
    %19 = vector.load %arg5[%c0_11, %c0_12] : memref<128x128xbf16, #tpu.memory_space<vmem>>, vector<128x128xbf16>
    %cst_13 = arith.constant dense<0.000000e+00> : vector<64x128xf32>
    %20 = tpu.matmul %18, %19, %cst_13 {dimension_numbers = #tpu.dot_dimension_numbers<[1], [0], [0], [1], [0, 0, 1, 1], [], []>} : vector<64x128xbf16>, vector<128x128xbf16>, vector<64x128xf32> -> vector<64x128xf32>
    %21 = arith.addf %17, %20 : vector<64x128xf32>
    %c0_14 = arith.constant 0 : index
    %c0_15 = arith.constant 0 : index
    %22 = vector.load %arg8[%c0_14, %c0_15] : memref<64x128xf32, #tpu.memory_space<vmem>>, vector<64x128xf32>
    tpu.vector_store %arg8[%c0_14, %c0_15], %21 {strides = array<i32>} : memref<64x128xf32, #tpu.memory_space<vmem>>, vector<64x128xf32>,
    %c0_i32_16 = arith.constant 0 : i32
    %23 = arith.cmpi eq, %arg1, %c0_i32_16 : i32
    %24 = arith.extui %23 : i1 to i32
    %c0_i32_17 = arith.constant 0 : i32
    %25 = arith.cmpi ne, %24, %c0_i32_17 : i32
    scf.if %25 {
      %c0_18 = arith.constant 0 : index
      %c0_19 = arith.constant 0 : index
      %26 = vector.load %arg8[%c0_18, %c0_19] : memref<64x128xf32, #tpu.memory_space<vmem>>, vector<64x128xf32>
      %c0_20 = arith.constant 0 : index
      %c0_21 = arith.constant 0 : index
      %27 = vector.load %arg6[%c0_20, %c0_21] : memref<1x128xf32, #tpu.memory_space<vmem>>, vector<1x128xf32>
      %28 = vector.broadcast %27 : vector<1x128xf32> to vector<64x128xf32>
      %29 = arith.addf %26, %28 : vector<64x128xf32>
      %c0_22 = arith.constant 0 : index
      %c0_23 = arith.constant 0 : index
      %30 = vector.load %arg7[%c0_22, %c0_23] : memref<64x128xf32, #tpu.memory_space<vmem>>, vector<64x128xf32>
      tpu.vector_store %arg7[%c0_22, %c0_23], %29 {strides = array<i32>} : memref<64x128xf32, #tpu.memory_space<vmem>>, vector<64x128xf32>,
    } else {
    }
    return
  }
  func.func @transform_0(%arg0: i32, %arg1: i32) -> (i32, i32) {
    %c0_i32 = arith.constant 0 : i32
    %c0_i32_0 = arith.constant 0 : i32
    return %arg0, %c0_i32 : i32, i32
  }
  func.func @transform_1(%arg0: i32, %arg1: i32) -> (i32, i32) {
    %c0_i32 = arith.constant 0 : i32
    %c0_i32_0 = arith.constant 0 : i32
    return %c0_i32, %arg1 : i32, i32
  }
  func.func @transform_2(%arg0: i32, %arg1: i32) -> (i32, i32) {
    %c0_i32 = arith.constant 0 : i32
    %c0_i32_0 = arith.constant 0 : i32
    return %c0_i32, %arg1 : i32, i32
  }
  func.func @transform_3(%arg0: i32, %arg1: i32) -> (i32, i32) {
    %c0_i32 = arith.constant 0 : i32
    %c0_i32_0 = arith.constant 0 : i32
    return %arg1, %c0_i32 : i32, i32
  }
  func.func @transform_4(%arg0: i32, %arg1: i32) -> (i32, i32) {
    %c0_i32 = arith.constant 0 : i32
    %c0_i32_0 = arith.constant 0 : i32
    %c0_i32_1 = arith.constant 0 : i32
    return %c0_i32, %c0_i32_0 : i32, i32
  }
  func.func @transform_5(%arg0: i32, %arg1: i32) -> (i32, i32) {
    %c0_i32 = arith.constant 0 : i32
    %c0_i32_0 = arith.constant 0 : i32
    return %arg0, %c0_i32 : i32, i32
  }
}

</mosaic_0001>

<llo_original>
// kernel: tpu_custom_call.1
$region0: #{tpu_custom_call.1}
  #allocation0 [shape = 'u32[]', space=smem, size = 0x4, offset = 0x4, fixed_abs, tag = 'smem constant byte address 0x4 - core index']
  #allocation1 [shape = 'u32[72,128]{1,0:T(1,128)}', space=vmem, size = 0x9000, scoped, tag = 'internal scratch']
  #allocation2 [shape = 'f32[64,128]{1,0:T(8,128)}', space=vmem, size = 0x8000, scoped, tag = 'scratch operand']
  %s0 = inlined_call_operand.hbm [shape: bf16[128,128], index: 0, kind: input, shape index: {}]
  %s1 = inlined_call_operand.hbm [shape: bf16[128,128], index: 1, kind: input, shape index: {}]
  %s2 = inlined_call_operand.vmem [shape: f32[1,128], index: 2, kind: input, shape index: {}]
  %s3 = inlined_call_operand.hbm [shape: bf16[128,128], index: 3, kind: input, shape index: {}]
  %s4 = inlined_call_operand.vmem [shape: f32[1,128], index: 4, kind: input, shape index: {}]
  %s5 = inlined_call_operand.hbm [shape: f32[128,128], index: 5, kind: output, shape index: {}]
  %s6 = sld [smem:[#allocation0]]
  $region73: #{tpu_custom_call.1} parent=0
    _
  %s8 = ssub.s32 1, %s6
  %s9 = scalar_select 0, %s8, %s6
  $region1: #{tpu_custom_call.1} parent=0
    #allocation3 [shape = 'u8[32768]{0}', space=vmem, size = 0x8000, scoped, tag = 'input window, operand 0']
    #allocation4 [shape = 's32[2]{0}', space=sflag, size = 0x8, scoped, tag = 'scoped memory for tpu_custom_call.1']
    #allocation5 [shape = 's32[2]{0}', space=sflag, size = 0x8, scoped, tag = 'scoped memory for tpu_custom_call.1']
    #allocation6 [shape = 'u8[32768]{0}', space=vmem, size = 0x8000, scoped, tag = 'input window, operand 1, single buffered']
    #allocation7 [shape = 's32[1]{0}', space=sflag, size = 0x4, scoped, tag = 'scoped memory for tpu_custom_call.1']
    #allocation8 [shape = 'u8[32768]{0}', space=vmem, size = 0x8000, scoped, tag = 'input window, operand 3, single buffered']
    #allocation9 [shape = 'u8[65536]{0}', space=vmem, size = 0x10000, scoped, tag = 'output window, operand 0']
    %10 = vsyncpa [#allocation4], 0
    %s11 = scalar_lea.sflag [#allocation4], 1
    %12 = vsyncpa %s11, 0
    %13 = vsyncpa [#allocation7], 0
    %14 = vsyncpa [#allocation5], 0
    %s15 = scalar_lea.sflag [#allocation5], 1
    %16 = vsyncpa %s15, 0
    loop: start=0, step=1, limit=4
    $region2: #{tpu_custom_call.1} parent=1 // loop_pre_header
      _
    $region3: #{tpu_custom_call.1} parent=1 // loop_header
      %s18 = sphi 0, %s22
      %p19 = scmp.ge.s32.totalorder %s18, 4
      %s25 = sphi 0, %s37
      %s26 = sphi 0, %s33
      %s27 = sphi 0, %s25
      %s28 = sphi 0, %s26
      %s29 = sphi 0, %s27
      %s30 = sphi 0, %s28
      %s40 = sphi 0, %s42
      %s43 = sphi 0, %s40
      %s44 = sphi 0, %s43
      %s60 = sphi 0, %s44
      %s66 = sphi 0, %s68
      %s69 = sphi 0, %s66
      %s70 = sphi 0, %s69
      %s86 = sphi 0, %s70
      %s92 = sphi 0, %s94
      %s95 = sphi 0, %s92
      %s96 = sphi 0, %s95
      %s112 = sphi 0, %s96
      %s118 = sphi 0, %s120
      %s121 = sphi 0, %s118
      %s122 = sphi 0, %s121
      %s138 = sphi 0, %s122
      %s142 = sphi 0, %s142
      %s144 = sphi 0, %s142
      %s145 = sphi 0, %s144
      %s159 = sphi 0, %s145
      %s165 = sphi 0, %s167
      %s168 = sphi 0, %s165
      %s169 = sphi 0, %s168
      %s185 = sphi 0, %s169
    $region4: #{tpu_custom_call.1} parent=1 // loop_header_branch
      %21 = sbr.rel (%p19) target = $region8
    $region5: #{tpu_custom_call.1} parent=1 // loop_body
      %s23 = ssub.s32 %s18, 1
      %s24 = ssub.s32 %s18, 2
      %s31 = sadd.s32 1, %s26
      %p32 = scmp.ge.s32.totalorder %s31, 1
      %s33 = scalar_select %p32, 0, %s31
      %s34 = sadd.s32 1, %s25
      %s35 = scalar_select %p32, %s34, %s25
      %p36 = scmp.ge.s32.totalorder %s35, 2
      %s37 = scalar_select %p36, 0, %s35
      %s38 = ssub.s32 %s25, %s37
      %p39 = scmp.eq.s32.totalorder %s38, 0
      %s41 = sadd.s32 %s40, 1
      %s42 = scalar_select %p39, %s40, %s41
      %p45 = pneg %p39
      %p46 = scmp.eq.s32.totalorder %s18, 1
      %p47 = por %p45, %p46
      %p48 = scmp.ne.s32.totalorder %s40, %s43
      %p49 = scmp.eq.s32.totalorder %s18, 0
      %p50 = por %p48, %p49
      %p51 = scmp.ne.s32.totalorder %s40, %s43
      %p52 = scmp.eq.s32.totalorder %s23, 1
      %p53 = por %p51, %p52
      %p54 = scmp.ne.s32.totalorder %s43, %s44
      %p55 = scmp.eq.s32.totalorder %s23, 0
      %p56 = por %p54, %p55
      %p57 = scmp.ne.s32.totalorder %s43, %s44
      %p58 = scmp.eq.s32.totalorder %s24, 1
      %p59 = por %p57, %p58
      %p61 = scmp.ne.s32.totalorder %s44, %s60
      %p62 = scmp.eq.s32.totalorder %s24, 0
      %p63 = por %p61, %p62
      %s64 = ssub.s32 %s26, %s33
      %p65 = scmp.eq.s32.totalorder %s64, 0
      %s67 = sadd.s32 %s66, 1
      %s68 = scalar_select %p65, %s66, %s67
      %p71 = pneg %p65
      %p72 = scmp.eq.s32.totalorder %s18, 1
      %p73 = por %p71, %p72
      %p74 = scmp.ne.s32.totalorder %s66, %s69
      %p75 = scmp.eq.s32.totalorder %s18, 0
      %p76 = por %p74, %p75
      %p77 = scmp.ne.s32.totalorder %s66, %s69
      %p78 = scmp.eq.s32.totalorder %s23, 1
      %p79 = por %p77, %p78
      %p80 = scmp.ne.s32.totalorder %s69, %s70
      %p81 = scmp.eq.s32.totalorder %s23, 0
      %p82 = por %p80, %p81
      %p83 = scmp.ne.s32.totalorder %s69, %s70
      %p84 = scmp.eq.s32.totalorder %s24, 1
      %p85 = por %p83, %p84
      %p87 = scmp.ne.s32.totalorder %s70, %s86
      %p88 = scmp.eq.s32.totalorder %s24, 0
      %p89 = por %p87, %p88
      %s90 = ssub.s32 %s26, %s33
      %p91 = scmp.eq.s32.totalorder %s90, 0
      %s93 = sadd.s32 %s92, 1
      %s94 = scalar_select %p91, %s92, %s93
      %p97 = pneg %p91
      %p98 = scmp.eq.s32.totalorder %s18, 1
      %p99 = por %p97, %p98
      %p100 = scmp.ne.s32.totalorder %s92, %s95
      %p101 = scmp.eq.s32.totalorder %s18, 0
      %p102 = por %p100, %p101
      %p103 = scmp.ne.s32.totalorder %s92, %s95
      %p104 = scmp.eq.s32.totalorder %s23, 1
      %p105 = por %p103, %p104
      %p106 = scmp.ne.s32.totalorder %s95, %s96
      %p107 = scmp.eq.s32.totalorder %s23, 0
      %p108 = por %p106, %p107
      %p109 = scmp.ne.s32.totalorder %s95, %s96
      %p110 = scmp.eq.s32.totalorder %s24, 1
      %p111 = por %p109, %p110
      %p113 = scmp.ne.s32.totalorder %s96, %s112
      %p114 = scmp.eq.s32.totalorder %s24, 0
      %p115 = por %p113, %p114
      %s116 = ssub.s32 %s26, %s33
      %p117 = scmp.eq.s32.totalorder %s116, 0
      %s119 = sadd.s32 %s118, 1
      %s120 = scalar_select %p117, %s118, %s119
      %p123 = pneg %p117
      %p124 = scmp.eq.s32.totalorder %s18, 1
      %p125 = por %p123, %p124
      %p126 = scmp.ne.s32.totalorder %s118, %s121
      %p127 = scmp.eq.s32.totalorder %s18, 0
      %p128 = por %p126, %p127
      %p129 = scmp.ne.s32.totalorder %s118, %s121
      %p130 = scmp.eq.s32.totalorder %s23, 1
      %p131 = por %p129, %p130
      %p132 = scmp.ne.s32.totalorder %s121, %s122
      %p133 = scmp.eq.s32.totalorder %s23, 0
      %p134 = por %p132, %p133
      %p135 = scmp.ne.s32.totalorder %s121, %s122
      %p136 = scmp.eq.s32.totalorder %s24, 1
      %p137 = por %p135, %p136
      %p139 = scmp.ne.s32.totalorder %s122, %s138
      %p140 = scmp.eq.s32.totalorder %s24, 0
      %p141 = por %p139, %p140
      %s143 = sadd.s32 %s142, 1
      %p146 = scmp.eq.s32.totalorder %s18, 1
      %p147 = scmp.ne.s32.totalorder %s142, %s144
      %p148 = scmp.eq.s32.totalorder %s18, 0
      %p149 = por %p147, %p148
      %p150 = scmp.ne.s32.totalorder %s142, %s144
      %p151 = scmp.eq.s32.totalorder %s23, 1
      %p152 = por %p150, %p151
      %p153 = scmp.ne.s32.totalorder %s144, %s145
      %p154 = scmp.eq.s32.totalorder %s23, 0
      %p155 = por %p153, %p154
      %p156 = scmp.ne.s32.totalorder %s144, %s145
      %p157 = scmp.eq.s32.totalorder %s24, 1
      %p158 = por %p156, %p157
      %p160 = scmp.ne.s32.totalorder %s145, %s159
      %p161 = scmp.eq.s32.totalorder %s24, 0
      %p162 = por %p160, %p161
      %s163 = ssub.s32 %s25, %s37
      %p164 = scmp.eq.s32.totalorder %s163, 0
      %s166 = sadd.s32 %s165, 1
      %s167 = scalar_select %p164, %s165, %s166
      %p170 = pneg %p164
      %p171 = scmp.eq.s32.totalorder %s18, 1
      %p172 = por %p170, %p171
      %p173 = scmp.ne.s32.totalorder %s165, %s168
      %p174 = scmp.eq.s32.totalorder %s18, 0
      %p175 = por %p173, %p174
      %p176 = scmp.ne.s32.totalorder %s165, %s168
      %p177 = scmp.eq.s32.totalorder %s23, 1
      %p178 = por %p176, %p177
      %p179 = scmp.ne.s32.totalorder %s168, %s169
      %p180 = scmp.eq.s32.totalorder %s23, 0
      %p181 = por %p179, %p180
      %p182 = scmp.ne.s32.totalorder %s168, %s169
      %p183 = scmp.eq.s32.totalorder %s24, 1
      %p184 = por %p182, %p183
      %p186 = scmp.ne.s32.totalorder %s169, %s185
      %p187 = scmp.eq.s32.totalorder %s24, 0
      %p188 = por %p186, %p187
      %p189 = scmp.le.s32.totalorder 1, %s18
      %p190 = scmp.lt.s32.totalorder %s18, 3
      %p191 = pnand %p189, %p190
      %p192 = pneg %p191
      // Predicated region
      $region9: #{tpu_custom_call.1} parent=5 // pred_check
        _
      $region10: #{tpu_custom_call.1} parent=5 // pred_check_branch
        %194 = sbr.rel (%p191) target = $region12
      $region11: #{tpu_custom_call.1} parent=5 // pred_region
        %s195 = ssub.s32 %s18, 1
        // Predicated region
        $region13: #{tpu_custom_call.1} parent=11 // pred_check
          %p196 = pneg %p82
        $region14: #{tpu_custom_call.1} parent=11 // pred_check_branch
          %198 = sbr.rel (%p196) target = $region16
        $region15: #{tpu_custom_call.1} parent=11 // pred_region
          %200 = vsyncadd [#allocation7], 0
          %s201 = smul.addr %s28, 4
          %s202 = scalar_lea.hbm %s1, %s201
          %s203 = sshll.u32 %s202, 4
          %s204 = int_to_ptr.hbm [resolvable:$true] %s203
          %s205 = sshll.u32 [#allocation6], 4
          %s206 = int_to_ptr.vmem [resolvable:$true] %s205
          %211 = dma.hbm_to_vmem [thread:$0]  %s204, 1024, %s206, [#allocation7], 64, 64, 4
        $region16: #{tpu_custom_call.1} parent=11 // pred_fallthru
          _
        // Predicated region
        $region17: #{tpu_custom_call.1} parent=11 // pred_check
          %p212 = pneg %p108
        $region18: #{tpu_custom_call.1} parent=11 // pred_check_branch
          %214 = sbr.rel (%p212) target = $region20
        $region19: #{tpu_custom_call.1} parent=11 // pred_region
          %p215 = scmp.lt.s32.totalorder %s28, 0
          %s216 = scalar_select %p215, %s28, 0
          %s217 = scalar_lea.vmem %s2, %s216
        $region20: #{tpu_custom_call.1} parent=11 // pred_fallthru
          _
        // Predicated region
        $region21: #{tpu_custom_call.1} parent=11 // pred_check
          %p218 = pneg %p134
        $region22: #{tpu_custom_call.1} parent=11 // pred_check_branch
          %220 = sbr.rel (%p218) target = $region24
        $region23: #{tpu_custom_call.1} parent=11 // pred_region
          %s221 = smul.u32 16, %s28
          %223 = vsyncadd [#allocation7], 0
          %s224 = smul.addr %s221, 4
          %s225 = scalar_lea.hbm %s3, %s224
          %s226 = sshll.u32 %s225, 4
          %s227 = int_to_ptr.hbm [resolvable:$true] %s226
          %s228 = sshll.u32 [#allocation8], 4
          %s229 = int_to_ptr.vmem [resolvable:$true] %s228
          %234 = dma.hbm_to_vmem [thread:$0]  %s227, 1024, %s229, [#allocation7], 64, 64, 4
        $region24: #{tpu_custom_call.1} parent=11 // pred_fallthru
          _
        // Predicated region
        $region25: #{tpu_custom_call.1} parent=11 // pred_check
          %p235 = pneg %p155
        $region26: #{tpu_custom_call.1} parent=11 // pred_check_branch
          %237 = sbr.rel (%p235) target = $region28
        $region27: #{tpu_custom_call.1} parent=11 // pred_region
          _
        $region28: #{tpu_custom_call.1} parent=11 // pred_fallthru
          _
      $region12: #{tpu_custom_call.1} parent=5 // pred_fallthru
        _
      %p238 = scmp.lt.s32.totalorder %s18, 2
      // Predicated region
      $region29: #{tpu_custom_call.1} parent=5 // pred_check
        %p239 = pneg %p238
      $region30: #{tpu_custom_call.1} parent=5 // pred_check_branch
        %241 = sbr.rel (%p239) target = $region32
      $region31: #{tpu_custom_call.1} parent=5 // pred_region
        // Predicated region
        $region33: #{tpu_custom_call.1} parent=31 // pred_check
          %p242 = pneg %p50
        $region34: #{tpu_custom_call.1} parent=31 // pred_check_branch
          %244 = sbr.rel (%p242) target = $region36
        $region35: #{tpu_custom_call.1} parent=31 // pred_region
          %s245 = sand.u32 %s40, 1
          %s246 = scalar_lea.sflag [#allocation4], %s245
          %s247 = sand.u32 %s40, 1
          %s248 = smul.addr %s247, 32
          %s249 = scalar_lea.vmem [#allocation3], %s248
          %s250 = smul.u32 8, %s25
          %252 = vsyncadd %s246, 0
          %s253 = smul.addr %s250, 4
          %s254 = scalar_lea.hbm %s0, %s253
          %s255 = sshll.u32 %s254, 4
          %s256 = int_to_ptr.hbm [resolvable:$true] %s255
          %s257 = sshll.u32 %s249, 4
          %s258 = int_to_ptr.vmem [resolvable:$true] %s257
          %263 = dma.hbm_to_vmem [thread:$0]  %s256, 512, %s258, %s246, 64, 64, 4
        $region36: #{tpu_custom_call.1} parent=31 // pred_fallthru
          _
      $region32: #{tpu_custom_call.1} parent=5 // pred_fallthru
        _
      %p264 = scmp.le.s32.totalorder 1, %s18
      %p265 = scmp.lt.s32.totalorder %s18, 3
      %p266 = pnand %p264, %p265
      %p267 = pneg %p266
      // Predicated region
      $region37: #{tpu_custom_call.1} parent=5 // pred_check
        _
      $region38: #{tpu_custom_call.1} parent=5 // pred_check_branch
        %269 = sbr.rel (%p266) target = $region40
      $region39: #{tpu_custom_call.1} parent=5 // pred_region
        %s270 = ssub.s32 %s18, 1
        %s271 = sand.u32 %s43, 1
        %s272 = scalar_lea.sflag [#allocation4], %s271
        %s273 = sand.u32 %s43, 1
        %s274 = smul.addr %s273, 32
        %s275 = scalar_lea.vmem [#allocation3], %s274
        // Predicated region
        $region41: #{tpu_custom_call.1} parent=39 // pred_check
          %p276 = pneg %p56
        $region42: #{tpu_custom_call.1} parent=39 // pred_check_branch
          %278 = sbr.rel (%p276) target = $region44
        $region43: #{tpu_custom_call.1} parent=39 // pred_region
          %280 = dma.done %s272, 512
        $region44: #{tpu_custom_call.1} parent=39 // pred_fallthru
          _
        // Predicated region
        $region45: #{tpu_custom_call.1} parent=39 // pred_check
          %p281 = pneg %p82
        $region46: #{tpu_custom_call.1} parent=39 // pred_check_branch
          %283 = sbr.rel (%p281) target = $region48
        $region47: #{tpu_custom_call.1} parent=39 // pred_region
          %285 = dma.done [#allocation7], 1024
        $region48: #{tpu_custom_call.1} parent=39 // pred_fallthru
          _
        // Predicated region
        $region49: #{tpu_custom_call.1} parent=39 // pred_check
          %p286 = pneg %p134
        $region50: #{tpu_custom_call.1} parent=39 // pred_check_branch
          %288 = sbr.rel (%p286) target = $region52
        $region51: #{tpu_custom_call.1} parent=39 // pred_region
          %290 = dma.done [#allocation7], 1024
        $region52: #{tpu_custom_call.1} parent=39 // pred_fallthru
          _
        %s291 = sand.u32 %s43, 1
        %s292 = scalar_lea.sflag [#allocation4], %s291
        %s293 = sand.u32 %s43, 1
        %s294 = smul.addr %s293, 32
        %s295 = scalar_lea.vmem [#allocation3], %s294
        %p296 = pneg %p56
        %p297 = pneg %p53
        %p298 = pneg %p82
        %p299 = pneg %p79
        %p300 = scmp.lt.s32.totalorder %s28, 0
        %s301 = scalar_select %p300, %s28, 0
        %s302 = scalar_lea.vmem %s2, %s301
        %p303 = pneg %p108
        %p304 = pneg %p105
        %p305 = pneg %p134
        %p306 = pneg %p131
        %p307 = pneg %p155
        %p308 = pneg %p152
        %p309 = pneg %p181
        %p310 = pneg %p178
        %s311 = sand.u32 %s168, 1
        %s312 = scalar_lea.sflag [#allocation5], %s311
        %s313 = sand.u32 %s168, 1
        %s314 = smul.addr %s313, 64
        %s315 = scalar_lea.vmem [#allocation9], %s314
        %s316 = smul.u32 8, %s27
        %p317 = scmp.lt.s32.totalorder %s28, 0
        %s318 = scalar_select %p317, %s28, 0
        %s319 = scalar_lea.vmem %s2, %s318
        %s320 = smul.u32 16, %s28
        %s321 = smul.u32 8, %s27
        %p322 = scmp.eq.s32.totalorder %s28, 0
        // Predicated region
        $region53: #{tpu_custom_call.1} parent=39 // pred_check
          %p323 = pneg %p322
        $region54: #{tpu_custom_call.1} parent=39 // pred_check_branch
          %325 = sbr.rel (%p323) target = $region56
        $region55: #{tpu_custom_call.1} parent=39 // pred_region
          %326 = vst [vmem:[#allocation2] sm:$0xff] 0.0
          %327 = vst [vmem:[#allocation2 + $0x8] sm:$0xff] 0.0
          %328 = vst [vmem:[#allocation2 + $0x10] sm:$0xff] 0.0
          %329 = vst [vmem:[#allocation2 + $0x18] sm:$0xff] 0.0
          %330 = vst [vmem:[#allocation2 + $0x20] sm:$0xff] 0.0
          %331 = vst [vmem:[#allocation2 + $0x28] sm:$0xff] 0.0
          %332 = vst [vmem:[#allocation2 + $0x30] sm:$0xff] 0.0
          %333 = vst [vmem:[#allocation2 + $0x38] sm:$0xff] 0.0
        $region56: #{tpu_custom_call.1} parent=39 // pred_fallthru
          _
        %v334 = vld [vmem:[%s275] sm:$0xf]
        %v335 = vld [vmem:[%s275 + $0x4] sm:$0xf]
        %v336 = vld [vmem:[%s275 + $0x8] sm:$0xf]
        %v337 = vld [vmem:[%s275 + $0xc] sm:$0xf]
        %v338 = vld [vmem:[%s275 + $0x10] sm:$0xf]
        %v339 = vld [vmem:[%s275 + $0x14] sm:$0xf]
        %v340 = vld [vmem:[%s275 + $0x18] sm:$0xf]
        %v341 = vld [vmem:[%s275 + $0x1c] sm:$0xf]
        %v342 = vld [vmem:[#allocation6] sm:$0xf]
        %v343 = vld [vmem:[#allocation6 + $0x4] sm:$0xf]
        %v344 = vld [vmem:[#allocation6 + $0x8] sm:$0xf]
        %v345 = vld [vmem:[#allocation6 + $0xc] sm:$0xf]
        %v346 = vld [vmem:[#allocation6 + $0x10] sm:$0xf]
        %v347 = vld [vmem:[#allocation6 + $0x14] sm:$0xf]
        %v348 = vld [vmem:[#allocation6 + $0x18] sm:$0xf]
        %v349 = vld [vmem:[#allocation6 + $0x1c] sm:$0xf]
        %v350 = vld [vmem:[#allocation6 + $0x20] sm:$0xf]
        %v351 = vld [vmem:[#allocation6 + $0x24] sm:$0xf]
        %v352 = vld [vmem:[#allocation6 + $0x28] sm:$0xf]
        %v353 = vld [vmem:[#allocation6 + $0x2c] sm:$0xf]
        %v354 = vld [vmem:[#allocation6 + $0x30] sm:$0xf]
        %v355 = vld [vmem:[#allocation6 + $0x34] sm:$0xf]
        %v356 = vld [vmem:[#allocation6 + $0x38] sm:$0xf]
        %v357 = vld [vmem:[#allocation6 + $0x3c] sm:$0xf]
        %v358 = vld [vmem:[%s319] sm:$0x1]
        %v360 = vperm.slane %v358, 0
        %v370 = vunpack.c.l.b16 %v334
        %v371 = vunpack.c.l.b16 %v335
        %v372 = vunpack.c.l.b16 %v336
        %v373 = vunpack.c.l.b16 %v337
        %v374 = vunpack.c.l.b16 %v338
        %v375 = vunpack.c.l.b16 %v339
        %v376 = vunpack.c.l.b16 %v340
        %v377 = vunpack.c.l.b16 %v341
        %v378 = vpack.c.b16 %v371, %v370
        %v379 = vpack.c.b16 %v373, %v372
        %v380 = vpack.c.b16 %v375, %v374
        %v381 = vpack.c.b16 %v377, %v376
        %v402 = vunpack.c.l.b16 %v342
        %v403 = vunpack.c.l.b16 %v343
        %v404 = vunpack.c.l.b16 %v344
        %v405 = vunpack.c.l.b16 %v345
        %v406 = vunpack.c.l.b16 %v346
        %v407 = vunpack.c.l.b16 %v347
        %v408 = vunpack.c.l.b16 %v348
        %v409 = vunpack.c.l.b16 %v349
        %v410 = vunpack.c.l.b16 %v350
        %v411 = vunpack.c.l.b16 %v351
        %v412 = vunpack.c.l.b16 %v352
        %v413 = vunpack.c.l.b16 %v353
        %v414 = vunpack.c.l.b16 %v354
        %v415 = vunpack.c.l.b16 %v355
        %v416 = vunpack.c.l.b16 %v356
        %v417 = vunpack.c.l.b16 %v357
        %v418 = vpack.c.b16 %v403, %v402
        %v419 = vpack.c.b16 %v405, %v404
        %v420 = vpack.c.b16 %v407, %v406
        %v421 = vpack.c.b16 %v409, %v408
        %v422 = vpack.c.b16 %v411, %v410
        %v423 = vpack.c.b16 %v413, %v412
        %v424 = vpack.c.b16 %v415, %v414
        %v425 = vpack.c.b16 %v417, %v416
        %434 = vmatpush.bf16.msra.mxu0 %v425
        %435 = vmatpush.bf16.msra.mxu0 %v424
        %436 = vmatpush.bf16.msra.mxu0 %v423
        %437 = vmatpush.bf16.msra.mxu0 %v422
        %438 = vmatpush.bf16.msra.mxu0 %v421
        %439 = vmatpush.bf16.msra.mxu0 %v420
        %440 = vmatpush.bf16.msra.mxu0 %v419
        %441 = vmatpush.bf16.msra.mxu0 %v418
        %442 = vmatmul.bf16.gmra.mxu0 %v378
        %v443 = vpop.f32.mrf.mxu0
        %v444 = vadd.f32 %v360, %v443
        %v445 = vpop.f32.mrf.mxu0
        %v446 = vadd.f32 %v360, %v445
        %447 = vmatmul.bf16.gmra.mxu0 %v379
        %v448 = vpop.f32.mrf.mxu0
        %v449 = vadd.f32 %v360, %v448
        %v450 = vpop.f32.mrf.mxu0
        %v451 = vadd.f32 %v360, %v450
        %452 = vmatmul.bf16.gmra.mxu0 %v380
        %v453 = vpop.f32.mrf.mxu0
        %v454 = vadd.f32 %v360, %v453
        %v455 = vpop.f32.mrf.mxu0
        %v456 = vadd.f32 %v360, %v455
        %457 = vmatmul.bf16.gmra.mxu0 %v381
        %v458 = vpop.f32.mrf.mxu0
        %v459 = vadd.f32 %v360, %v458
        %v460 = vpop.f32.mrf.mxu0
        %v461 = vadd.f32 %v360, %v460
        %462 = vdwg.mxu0
        %v463 = vmul.f32 %v444, 0.5
        %v464 = vmul.f32 %v446, 0.5
        %v465 = vmul.f32 %v449, 0.5
        %v466 = vmul.f32 %v451, 0.5
        %v467 = vmul.f32 %v454, 0.5
        %v468 = vmul.f32 %v456, 0.5
        %v469 = vmul.f32 %v459, 0.5
        %v470 = vmul.f32 %v461, 0.5
        %v471 = vmul.f32 %v444, 0.70710677
        %v472 = vmul.f32 %v446, 0.70710677
        %v473 = vmul.f32 %v449, 0.70710677
        %v474 = vmul.f32 %v451, 0.70710677
        %v475 = vmul.f32 %v454, 0.70710677
        %v476 = vmul.f32 %v456, 0.70710677
        %v477 = vmul.f32 %v459, 0.70710677
        %v478 = vmul.f32 %v461, 0.70710677
        %v479 = vmul.f32 %v471, %v471
        %v480 = vmin.f32 16.0, %v479
        %v481 = vmul.f32 %v480, 2.1237322e-06
        %v482 = vadd.f32 %v481, 0.00028619796
        %v483 = vmul.f32 %v480, %v482
        %v484 = vadd.f32 %v483, 0.0036580483
        %v485 = vmul.f32 %v480, %v484
        %v486 = vadd.f32 %v485, 0.05243302
        %v487 = vmul.f32 %v480, %v486
        %v488 = vadd.f32 %v487, 0.18741608
        %v489 = vmul.f32 %v480, %v488
        %v490 = vadd.f32 %v489, 1.1283791
        %v491 = vmul.f32 %v471, %v490
        %v492 = vmul.f32 %v480, 3.8918573e-05
        %v493 = vadd.f32 %v492, 0.001143296
        %v494 = vmul.f32 %v480, %v493
        %v495 = vadd.f32 %v494, 0.014752088
        %v496 = vmul.f32 %v480, %v495
        %v497 = vadd.f32 %v496, 0.112945676
        %v498 = vmul.f32 %v480, %v497
        %v499 = vadd.f32 %v498, 0.4994258
        %v500 = vmul.f32 %v480, %v499
        %v501 = vadd.f32 %v500, 1.0
        %v502 = vrcp.pop %v501
        %v503 = vmul.f32 %v501, %v502
        %v504 = vsub.f32 1.0, %v503
        %v505 = vmul.f32 %v502, %v504
        %v506 = vadd.f32 %v502, %v505
        %vm507 = vweird.f32 %v501
        %vm508 = vweird.f32 %v502
        %vm509 = vmor %vm507, %vm508
        %v510 = vsel %vm509, %v502, %v506
        %v511 = vand.u32 2147483647, %v501
        %vm512 = vcmp.eq.f32.partialorder %v511, 8.507059e+37
        %v513 = vand.u32 %v501, 2147483648
        %v514 = vor.u32 1.1754944e-38, %v513
        %v515 = vsel %vm512, %v514, %v510
        %v516 = vmul.f32 %v491, %v515
        %v517 = vmin.f32 %v516, 1.0
        %v518 = vmax.f32 %v517, -1.0
        %v519 = vmul.f32 %v472, %v472
        %v520 = vmin.f32 16.0, %v519
        %v521 = vmul.f32 %v520, 2.1237322e-06
        %v522 = vadd.f32 %v521, 0.00028619796
        %v523 = vmul.f32 %v520, %v522
        %v524 = vadd.f32 %v523, 0.0036580483
        %v525 = vmul.f32 %v520, %v524
        %v526 = vadd.f32 %v525, 0.05243302
        %v527 = vmul.f32 %v520, %v526
        %v528 = vadd.f32 %v527, 0.18741608
        %v529 = vmul.f32 %v520, %v528
        %v530 = vadd.f32 %v529, 1.1283791
        %v531 = vmul.f32 %v472, %v530
        %v532 = vmul.f32 %v520, 3.8918573e-05
        %v533 = vadd.f32 %v532, 0.001143296
        %v534 = vmul.f32 %v520, %v533
        %v535 = vadd.f32 %v534, 0.014752088
        %v536 = vmul.f32 %v520, %v535
        %v537 = vadd.f32 %v536, 0.112945676
        %v538 = vmul.f32 %v520, %v537
        %v539 = vadd.f32 %v538, 0.4994258
        %v540 = vmul.f32 %v520, %v539
        %v541 = vadd.f32 %v540, 1.0
        %v542 = vrcp.pop %v541
        %v543 = vmul.f32 %v541, %v542
        %v544 = vsub.f32 1.0, %v543
        %v545 = vmul.f32 %v542, %v544
        %v546 = vadd.f32 %v542, %v545
        %vm547 = vweird.f32 %v541
        %vm548 = vweird.f32 %v542
        %vm549 = vmor %vm547, %vm548
        %v550 = vsel %vm549, %v542, %v546
        %v551 = vand.u32 2147483647, %v541
        %vm552 = vcmp.eq.f32.partialorder %v551, 8.507059e+37
        %v553 = vand.u32 %v541, 2147483648
        %v554 = vor.u32 1.1754944e-38, %v553
        %v555 = vsel %vm552, %v554, %v550
        %v556 = vmul.f32 %v531, %v555
        %v557 = vmin.f32 %v556, 1.0
        %v558 = vmax.f32 %v557, -1.0
        %v559 = vmul.f32 %v473, %v473
        %v560 = vmin.f32 16.0, %v559
        %v561 = vmul.f32 %v560, 2.1237322e-06
        %v562 = vadd.f32 %v561, 0.00028619796
        %v563 = vmul.f32 %v560, %v562
        %v564 = vadd.f32 %v563, 0.0036580483
        %v565 = vmul.f32 %v560, %v564
        %v566 = vadd.f32 %v565, 0.05243302
        %v567 = vmul.f32 %v560, %v566
        %v568 = vadd.f32 %v567, 0.18741608
        %v569 = vmul.f32 %v560, %v568
        %v570 = vadd.f32 %v569, 1.1283791
        %v571 = vmul.f32 %v473, %v570
        %v572 = vmul.f32 %v560, 3.8918573e-05
        %v573 = vadd.f32 %v572, 0.001143296
        %v574 = vmul.f32 %v560, %v573
        %v575 = vadd.f32 %v574, 0.014752088
        %v576 = vmul.f32 %v560, %v575
        %v577 = vadd.f32 %v576, 0.112945676
        %v578 = vmul.f32 %v560, %v577
        %v579 = vadd.f32 %v578, 0.4994258
        %v580 = vmul.f32 %v560, %v579
        %v581 = vadd.f32 %v580, 1.0
        %v582 = vrcp.pop %v581
        %v583 = vmul.f32 %v581, %v582
        %v584 = vsub.f32 1.0, %v583
        %v585 = vmul.f32 %v582, %v584
        %v586 = vadd.f32 %v582, %v585
        %vm587 = vweird.f32 %v581
        %vm588 = vweird.f32 %v582
        %vm589 = vmor %vm587, %vm588
        %v590 = vsel %vm589, %v582, %v586
        %v591 = vand.u32 2147483647, %v581
        %vm592 = vcmp.eq.f32.partialorder %v591, 8.507059e+37
        %v593 = vand.u32 %v581, 2147483648
        %v594 = vor.u32 1.1754944e-38, %v593
        %v595 = vsel %vm592, %v594, %v590
        %v596 = vmul.f32 %v571, %v595
        %v597 = vmin.f32 %v596, 1.0
        %v598 = vmax.f32 %v597, -1.0
        %v599 = vmul.f32 %v474, %v474
        %v600 = vmin.f32 16.0, %v599
        %v601 = vmul.f32 %v600, 2.1237322e-06
        %v602 = vadd.f32 %v601, 0.00028619796
        %v603 = vmul.f32 %v600, %v602
        %v604 = vadd.f32 %v603, 0.0036580483
        %v605 = vmul.f32 %v600, %v604
        %v606 = vadd.f32 %v605, 0.05243302
        %v607 = vmul.f32 %v600, %v606
        %v608 = vadd.f32 %v607, 0.18741608
        %v609 = vmul.f32 %v600, %v608
        %v610 = vadd.f32 %v609, 1.1283791
        %v611 = vmul.f32 %v474, %v610
        %v612 = vmul.f32 %v600, 3.8918573e-05
        %v613 = vadd.f32 %v612, 0.001143296
        %v614 = vmul.f32 %v600, %v613
        %v615 = vadd.f32 %v614, 0.014752088
        %v616 = vmul.f32 %v600, %v615
        %v617 = vadd.f32 %v616, 0.112945676
        %v618 = vmul.f32 %v600, %v617
        %v619 = vadd.f32 %v618, 0.4994258
        %v620 = vmul.f32 %v600, %v619
        %v621 = vadd.f32 %v620, 1.0
        %v622 = vrcp.pop %v621
        %v623 = vmul.f32 %v621, %v622
        %v624 = vsub.f32 1.0, %v623
        %v625 = vmul.f32 %v622, %v624
        %v626 = vadd.f32 %v622, %v625
        %vm627 = vweird.f32 %v621
        %vm628 = vweird.f32 %v622
        %vm629 = vmor %vm627, %vm628
        %v630 = vsel %vm629, %v622, %v626
        %v631 = vand.u32 2147483647, %v621
        %vm632 = vcmp.eq.f32.partialorder %v631, 8.507059e+37
        %v633 = vand.u32 %v621, 2147483648
        %v634 = vor.u32 1.1754944e-38, %v633
        %v635 = vsel %vm632, %v634, %v630
        %v636 = vmul.f32 %v611, %v635
        %v637 = vmin.f32 %v636, 1.0
        %v638 = vmax.f32 %v637, -1.0
        %v639 = vmul.f32 %v475, %v475
        %v640 = vmin.f32 16.0, %v639
        %v641 = vmul.f32 %v640, 2.1237322e-06
        %v642 = vadd.f32 %v641, 0.00028619796
        %v643 = vmul.f32 %v640, %v642
        %v644 = vadd.f32 %v643, 0.0036580483
        %v645 = vmul.f32 %v640, %v644
        %v646 = vadd.f32 %v645, 0.05243302
        %v647 = vmul.f32 %v640, %v646
        %v648 = vadd.f32 %v647, 0.18741608
        %v649 = vmul.f32 %v640, %v648
        %v650 = vadd.f32 %v649, 1.1283791
        %v651 = vmul.f32 %v475, %v650
        %v652 = vmul.f32 %v640, 3.8918573e-05
        %v653 = vadd.f32 %v652, 0.001143296
        %v654 = vmul.f32 %v640, %v653
        %v655 = vadd.f32 %v654, 0.014752088
        %v656 = vmul.f32 %v640, %v655
        %v657 = vadd.f32 %v656, 0.112945676
        %v658 = vmul.f32 %v640, %v657
        %v659 = vadd.f32 %v658, 0.4994258
        %v660 = vmul.f32 %v640, %v659
        %v661 = vadd.f32 %v660, 1.0
        %v662 = vrcp.pop %v661
        %v663 = vmul.f32 %v661, %v662
        %v664 = vsub.f32 1.0, %v663
        %v665 = vmul.f32 %v662, %v664
        %v666 = vadd.f32 %v662, %v665
        %vm667 = vweird.f32 %v661
        %vm668 = vweird.f32 %v662
        %vm669 = vmor %vm667, %vm668
        %v670 = vsel %vm669, %v662, %v666
        %v671 = vand.u32 2147483647, %v661
        %vm672 = vcmp.eq.f32.partialorder %v671, 8.507059e+37
        %v673 = vand.u32 %v661, 2147483648
        %v674 = vor.u32 1.1754944e-38, %v673
        %v675 = vsel %vm672, %v674, %v670
        %v676 = vmul.f32 %v651, %v675
        %v677 = vmin.f32 %v676, 1.0
        %v678 = vmax.f32 %v677, -1.0
        %v679 = vmul.f32 %v476, %v476
        %v680 = vmin.f32 16.0, %v679
        %v681 = vmul.f32 %v680, 2.1237322e-06
        %v682 = vadd.f32 %v681, 0.00028619796
        %v683 = vmul.f32 %v680, %v682
        %v684 = vadd.f32 %v683, 0.0036580483
        %v685 = vmul.f32 %v680, %v684
        %v686 = vadd.f32 %v685, 0.05243302
        %v687 = vmul.f32 %v680, %v686
        %v688 = vadd.f32 %v687, 0.18741608
        %v689 = vmul.f32 %v680, %v688
        %v690 = vadd.f32 %v689, 1.1283791
        %v691 = vmul.f32 %v476, %v690
        %v692 = vmul.f32 %v680, 3.8918573e-05
        %v693 = vadd.f32 %v692, 0.001143296
        %v694 = vmul.f32 %v680, %v693
        %v695 = vadd.f32 %v694, 0.014752088
        %v696 = vmul.f32 %v680, %v695
        %v697 = vadd.f32 %v696, 0.112945676
        %v698 = vmul.f32 %v680, %v697
        %v699 = vadd.f32 %v698, 0.4994258
        %v700 = vmul.f32 %v680, %v699
        %v701 = vadd.f32 %v700, 1.0
        %v702 = vrcp.pop %v701
        %v703 = vmul.f32 %v701, %v702
        %v704 = vsub.f32 1.0, %v703
        %v705 = vmul.f32 %v702, %v704
        %v706 = vadd.f32 %v702, %v705
        %vm707 = vweird.f32 %v701
        %vm708 = vweird.f32 %v702
        %vm709 = vmor %vm707, %vm708
        %v710 = vsel %vm709, %v702, %v706
        %v711 = vand.u32 2147483647, %v701
        %vm712 = vcmp.eq.f32.partialorder %v711, 8.507059e+37
        %v713 = vand.u32 %v701, 2147483648
        %v714 = vor.u32 1.1754944e-38, %v713
        %v715 = vsel %vm712, %v714, %v710
        %v716 = vmul.f32 %v691, %v715
        %v717 = vmin.f32 %v716, 1.0
        %v718 = vmax.f32 %v717, -1.0
        %v719 = vmul.f32 %v477, %v477
        %v720 = vmin.f32 16.0, %v719
        %v721 = vmul.f32 %v720, 2.1237322e-06
        %v722 = vadd.f32 %v721, 0.00028619796
        %v723 = vmul.f32 %v720, %v722
        %v724 = vadd.f32 %v723, 0.0036580483
        %v725 = vmul.f32 %v720, %v724
        %v726 = vadd.f32 %v725, 0.05243302
        %v727 = vmul.f32 %v720, %v726
        %v728 = vadd.f32 %v727, 0.18741608
        %v729 = vmul.f32 %v720, %v728
        %v730 = vadd.f32 %v729, 1.1283791
        %v731 = vmul.f32 %v477, %v730
        %v732 = vmul.f32 %v720, 3.8918573e-05
        %v733 = vadd.f32 %v732, 0.001143296
        %v734 = vmul.f32 %v720, %v733
        %v735 = vadd.f32 %v734, 0.014752088
        %v736 = vmul.f32 %v720, %v735
        %v737 = vadd.f32 %v736, 0.112945676
        %v738 = vmul.f32 %v720, %v737
        %v739 = vadd.f32 %v738, 0.4994258
        %v740 = vmul.f32 %v720, %v739
        %v741 = vadd.f32 %v740, 1.0
        %v742 = vrcp.pop %v741
        %v743 = vmul.f32 %v741, %v742
        %v744 = vsub.f32 1.0, %v743
        %v745 = vmul.f32 %v742, %v744
        %v746 = vadd.f32 %v742, %v745
        %vm747 = vweird.f32 %v741
        %vm748 = vweird.f32 %v742
        %vm749 = vmor %vm747, %vm748
        %v750 = vsel %vm749, %v742, %v746
        %v751 = vand.u32 2147483647, %v741
        %vm752 = vcmp.eq.f32.partialorder %v751, 8.507059e+37
        %v753 = vand.u32 %v741, 2147483648
        %v754 = vor.u32 1.1754944e-38, %v753
        %v755 = vsel %vm752, %v754, %v750
        %v756 = vmul.f32 %v731, %v755
        %v757 = vmin.f32 %v756, 1.0
        %v758 = vmax.f32 %v757, -1.0
        %v759 = vmul.f32 %v478, %v478
        %v760 = vmin.f32 16.0, %v759
        %v761 = vmul.f32 %v760, 2.1237322e-06
        %v762 = vadd.f32 %v761, 0.00028619796
        %v763 = vmul.f32 %v760, %v762
        %v764 = vadd.f32 %v763, 0.0036580483
        %v765 = vmul.f32 %v760, %v764
        %v766 = vadd.f32 %v765, 0.05243302
        %v767 = vmul.f32 %v760, %v766
        %v768 = vadd.f32 %v767, 0.18741608
        %v769 = vmul.f32 %v760, %v768
        %v770 = vadd.f32 %v769, 1.1283791
        %v771 = vmul.f32 %v478, %v770
        %v772 = vmul.f32 %v760, 3.8918573e-05
        %v773 = vadd.f32 %v772, 0.001143296
        %v774 = vmul.f32 %v760, %v773
        %v775 = vadd.f32 %v774, 0.014752088
        %v776 = vmul.f32 %v760, %v775
        %v777 = vadd.f32 %v776, 0.112945676
        %v778 = vmul.f32 %v760, %v777
        %v779 = vadd.f32 %v778, 0.4994258
        %v780 = vmul.f32 %v760, %v779
        %v781 = vadd.f32 %v780, 1.0
        %v782 = vrcp.pop %v781
        %v783 = vmul.f32 %v781, %v782
        %v784 = vsub.f32 1.0, %v783
        %v785 = vmul.f32 %v782, %v784
        %v786 = vadd.f32 %v782, %v785
        %vm787 = vweird.f32 %v781
        %vm788 = vweird.f32 %v782
        %vm789 = vmor %vm787, %vm788
        %v790 = vsel %vm789, %v782, %v786
        %v791 = vand.u32 2147483647, %v781
        %vm792 = vcmp.eq.f32.partialorder %v791, 8.507059e+37
        %v793 = vand.u32 %v781, 2147483648
        %v794 = vor.u32 1.1754944e-38, %v793
        %v795 = vsel %vm792, %v794, %v790
        %v796 = vmul.f32 %v771, %v795
        %v797 = vmin.f32 %v796, 1.0
        %v798 = vmax.f32 %v797, -1.0
        %v799 = vadd.f32 %v518, 1.0
        %v800 = vadd.f32 %v558, 1.0
        %v801 = vadd.f32 %v598, 1.0
        %v802 = vadd.f32 %v638, 1.0
        %v803 = vadd.f32 %v678, 1.0
        %v804 = vadd.f32 %v718, 1.0
        %v805 = vadd.f32 %v758, 1.0
        %v806 = vadd.f32 %v798, 1.0
        %v807 = vmul.f32 %v463, %v799
        %v808 = vmul.f32 %v464, %v800
        %v809 = vmul.f32 %v465, %v801
        %v810 = vmul.f32 %v466, %v802
        %v811 = vmul.f32 %v467, %v803
        %v812 = vmul.f32 %v468, %v804
        %v813 = vmul.f32 %v469, %v805
        %v814 = vmul.f32 %v470, %v806
        %v815 = vld [vmem:[#allocation2] sm:$0xff]
        %v816 = vld [vmem:[#allocation2 + $0x8] sm:$0xff]
        %v817 = vld [vmem:[#allocation2 + $0x10] sm:$0xff]
        %v818 = vld [vmem:[#allocation2 + $0x18] sm:$0xff]
        %v819 = vld [vmem:[#allocation2 + $0x20] sm:$0xff]
        %v820 = vld [vmem:[#allocation2 + $0x28] sm:$0xff]
        %v821 = vld [vmem:[#allocation2 + $0x30] sm:$0xff]
        %v822 = vld [vmem:[#allocation2 + $0x38] sm:$0xff]
        %v823 = vpack.c.bf16 %v808, %v807
        %v824 = vpack.c.bf16 %v810, %v809
        %v825 = vpack.c.bf16 %v812, %v811
        %v826 = vpack.c.bf16 %v814, %v813
        %v827 = vld [vmem:[#allocation8] sm:$0xf]
        %v828 = vld [vmem:[#allocation8 + $0x4] sm:$0xf]
        %v829 = vld [vmem:[#allocation8 + $0x8] sm:$0xf]
        %v830 = vld [vmem:[#allocation8 + $0xc] sm:$0xf]
        %v831 = vld [vmem:[#allocation8 + $0x10] sm:$0xf]
        %v832 = vld [vmem:[#allocation8 + $0x14] sm:$0xf]
        %v833 = vld [vmem:[#allocation8 + $0x18] sm:$0xf]
        %v834 = vld [vmem:[#allocation8 + $0x1c] sm:$0xf]
        %v835 = vld [vmem:[#allocation8 + $0x20] sm:$0xf]
        %v836 = vld [vmem:[#allocation8 + $0x24] sm:$0xf]
        %v837 = vld [vmem:[#allocation8 + $0x28] sm:$0xf]
        %v838 = vld [vmem:[#allocation8 + $0x2c] sm:$0xf]
        %v839 = vld [vmem:[#allocation8 + $0x30] sm:$0xf]
        %v840 = vld [vmem:[#allocation8 + $0x34] sm:$0xf]
        %v841 = vld [vmem:[#allocation8 + $0x38] sm:$0xf]
        %v842 = vld [vmem:[#allocation8 + $0x3c] sm:$0xf]
        %v859 = vunpack.c.l.b16 %v827
        %v860 = vunpack.c.l.b16 %v828
        %v861 = vunpack.c.l.b16 %v829
        %v862 = vunpack.c.l.b16 %v830
        %v863 = vunpack.c.l.b16 %v831
        %v864 = vunpack.c.l.b16 %v832
        %v865 = vunpack.c.l.b16 %v833
        %v866 = vunpack.c.l.b16 %v834
        %v867 = vunpack.c.l.b16 %v835
        %v868 = vunpack.c.l.b16 %v836
        %v869 = vunpack.c.l.b16 %v837
        %v870 = vunpack.c.l.b16 %v838
        %v871 = vunpack.c.l.b16 %v839
        %v872 = vunpack.c.l.b16 %v840
        %v873 = vunpack.c.l.b16 %v841
        %v874 = vunpack.c.l.b16 %v842
        %v875 = vpack.c.b16 %v860, %v859
        %v876 = vpack.c.b16 %v862, %v861
        %v877 = vpack.c.b16 %v864, %v863
        %v878 = vpack.c.b16 %v866, %v865
        %v879 = vpack.c.b16 %v868, %v867
        %v880 = vpack.c.b16 %v870, %v869
        %v881 = vpack.c.b16 %v872, %v871
        %v882 = vpack.c.b16 %v874, %v873
        %891 = vmatpush.bf16.msra.mxu0 %v882
        %892 = vmatpush.bf16.msra.mxu0 %v881
        %893 = vmatpush.bf16.msra.mxu0 %v880
        %894 = vmatpush.bf16.msra.mxu0 %v879
        %895 = vmatpush.bf16.msra.mxu0 %v878
        %896 = vmatpush.bf16.msra.mxu0 %v877
        %897 = vmatpush.bf16.msra.mxu0 %v876
        %898 = vmatpush.bf16.msra.mxu0 %v875
        %899 = vmatmul.bf16.gmra.mxu0 %v823
        %v900 = vpop.f32.mrf.mxu0
        %v901 = vadd.f32 0.0, %v900
        %v902 = vpop.f32.mrf.mxu0
        %v903 = vadd.f32 0.0, %v902
        %904 = vmatmul.bf16.gmra.mxu0 %v824
        %v905 = vpop.f32.mrf.mxu0
        %v906 = vadd.f32 0.0, %v905
        %v907 = vpop.f32.mrf.mxu0
        %v908 = vadd.f32 0.0, %v907
        %909 = vmatmul.bf16.gmra.mxu0 %v825
        %v910 = vpop.f32.mrf.mxu0
        %v911 = vadd.f32 0.0, %v910
        %v912 = vpop.f32.mrf.mxu0
        %v913 = vadd.f32 0.0, %v912
        %914 = vmatmul.bf16.gmra.mxu0 %v826
        %v915 = vpop.f32.mrf.mxu0
        %v916 = vadd.f32 0.0, %v915
        %v917 = vpop.f32.mrf.mxu0
        %v918 = vadd.f32 0.0, %v917
        %919 = vdwg.mxu0
        %v920 = vadd.f32 %v815, %v901
        %v921 = vadd.f32 %v816, %v903
        %v922 = vadd.f32 %v817, %v906
        %v923 = vadd.f32 %v818, %v908
        %v924 = vadd.f32 %v819, %v911
        %v925 = vadd.f32 %v820, %v913
        %v926 = vadd.f32 %v821, %v916
        %v927 = vadd.f32 %v822, %v918
        %928 = vst [vmem:[#allocation2] sm:$0xff] %v920
        %929 = vst [vmem:[#allocation2 + $0x8] sm:$0xff] %v921
        %930 = vst [vmem:[#allocation2 + $0x10] sm:$0xff] %v922
        %931 = vst [vmem:[#allocation2 + $0x18] sm:$0xff] %v923
        %932 = vst [vmem:[#allocation2 + $0x20] sm:$0xff] %v924
        %933 = vst [vmem:[#allocation2 + $0x28] sm:$0xff] %v925
        %934 = vst [vmem:[#allocation2 + $0x30] sm:$0xff] %v926
        %935 = vst [vmem:[#allocation2 + $0x38] sm:$0xff] %v927
        // Predicated region
        $region57: #{tpu_custom_call.1} parent=39 // pred_check
          %p936 = pneg %p322
        $region58: #{tpu_custom_call.1} parent=39 // pred_check_branch
          %938 = sbr.rel (%p936) target = $region60
        $region59: #{tpu_custom_call.1} parent=39 // pred_region
          %v939 = vld [vmem:[#allocation2] sm:$0xff]
          %v940 = vld [vmem:[#allocation2 + $0x8] sm:$0xff]
          %v941 = vld [vmem:[#allocation2 + $0x10] sm:$0xff]
          %v942 = vld [vmem:[#allocation2 + $0x18] sm:$0xff]
          %v943 = vld [vmem:[#allocation2 + $0x20] sm:$0xff]
          %v944 = vld [vmem:[#allocation2 + $0x28] sm:$0xff]
          %v945 = vld [vmem:[#allocation2 + $0x30] sm:$0xff]
          %v946 = vld [vmem:[#allocation2 + $0x38] sm:$0xff]
          %v947 = vld [vmem:[%s4] sm:$0x1]
          %v949 = vperm.slane %v947, 0
          %v951 = vadd.f32 %v939, %v949
          %v952 = vadd.f32 %v940, %v949
          %v953 = vadd.f32 %v941, %v949
          %v954 = vadd.f32 %v942, %v949
          %v955 = vadd.f32 %v943, %v949
          %v956 = vadd.f32 %v944, %v949
          %v957 = vadd.f32 %v945, %v949
          %v958 = vadd.f32 %v946, %v949
          %959 = vst [vmem:[%s315] sm:$0xff] %v951
          %960 = vst [vmem:[%s315 + $0x8] sm:$0xff] %v952
          %961 = vst [vmem:[%s315 + $0x10] sm:$0xff] %v953
          %962 = vst [vmem:[%s315 + $0x18] sm:$0xff] %v954
          %963 = vst [vmem:[%s315 + $0x20] sm:$0xff] %v955
          %964 = vst [vmem:[%s315 + $0x28] sm:$0xff] %v956
          %965 = vst [vmem:[%s315 + $0x30] sm:$0xff] %v957
          %966 = vst [vmem:[%s315 + $0x38] sm:$0xff] %v958
        $region60: #{tpu_custom_call.1} parent=39 // pred_fallthru
          _
        %s967 = sand.u32 %s168, 1
        %s968 = scalar_lea.sflag [#allocation5], %s967
        %s969 = sand.u32 %s168, 1
        %s970 = smul.addr %s969, 64
        %s971 = scalar_lea.vmem [#allocation9], %s970
        // Predicated region
        $region61: #{tpu_custom_call.1} parent=39 // pred_check
          %p972 = pneg %p178
        $region62: #{tpu_custom_call.1} parent=39 // pred_check_branch
          %974 = sbr.rel (%p972) target = $region64
        $region63: #{tpu_custom_call.1} parent=39 // pred_region
          %s975 = smul.u32 8, %s27
          %977 = vsyncadd %s968, 0
          %s978 = smul.addr %s975, 8
          %s979 = scalar_lea.hbm %s5, %s978
          %s980 = sshll.u32 %s971, 4
          %s981 = int_to_ptr.vmem [resolvable:$true] %s980
          %s982 = sshll.u32 %s979, 4
          %s983 = int_to_ptr.hbm [resolvable:$true] %s982
          %988 = dma.vmem_to_hbm [thread:$0]  %s981, 1024, %s983, %s968, 128, 128, 8
        $region64: #{tpu_custom_call.1} parent=39 // pred_fallthru
          _
      $region40: #{tpu_custom_call.1} parent=5 // pred_fallthru
        _
      %p989 = scmp.le.s32.totalorder 2, %s18
      // Predicated region
      $region65: #{tpu_custom_call.1} parent=5 // pred_check
        %p990 = pneg %p989
      $region66: #{tpu_custom_call.1} parent=5 // pred_check_branch
        %992 = sbr.rel (%p990) target = $region68
      $region67: #{tpu_custom_call.1} parent=5 // pred_region
        %s993 = ssub.s32 %s18, 2
        // Predicated region
        $region69: #{tpu_custom_call.1} parent=67 // pred_check
          %p994 = pneg %p184
        $region70: #{tpu_custom_call.1} parent=67 // pred_check_branch
          %996 = sbr.rel (%p994) target = $region72
        $region71: #{tpu_custom_call.1} parent=67 // pred_region
          %s997 = sand.u32 %s169, 1
          %s998 = scalar_lea.sflag [#allocation5], %s997
          %s999 = sand.u32 %s169, 1
          %s1000 = smul.addr %s999, 64
          %s1001 = scalar_lea.vmem [#allocation9], %s1000
          %1003 = dma.done %s998, 1024
        $region72: #{tpu_custom_call.1} parent=67 // pred_fallthru
          _
      $region68: #{tpu_custom_call.1} parent=5 // pred_fallthru
        _
    $region6: #{tpu_custom_call.1} parent=1 // loop_footer
      %s22 = sadd.s32 1, %s18
    $region7: #{tpu_custom_call.1} parent=1 // loop_footer_branch
      %17 = sbr.rel target = $region3
    $region8: #{tpu_custom_call.1} parent=1 // loop_exit
      _
    %1004 = vsyncpa [#allocation4], 1
    %s1005 = scalar_lea.sflag [#allocation4], 1
    %1006 = vsyncpa %s1005, 1
    %1007 = vsyncpa [#allocation7], 1
    %1008 = vsyncpa [#allocation5], 1
    %s1009 = scalar_lea.sflag [#allocation5], 1
    %1010 = vsyncpa %s1009, 1

</llo_original>
